<compile_context>
chip_gen: v6e
topology: v6e:2x2x1
jax: 0.10.0
libtpu: 0.0.40
codegen_flags: <defaults>
</compile_context>

<pallas_src>
import functools

import jax
import jax.numpy as jnp
import numpy as np
from jax import lax
from jax.experimental import pallas as pl
from jax.experimental.pallas import tpu as pltpu


def _largest_divisor_tile(total, quantum, max_tile):
    """Largest multiple of `quantum` that divides `total` and is <= max_tile.

    Falls back to `total` (full extent == array dim, always a legal block)."""
    cap = (min(total, max_tile) // quantum) * quantum
    for t in range(cap, 0, -quantum):
        if total % t == 0:
            return t
    return total


# --------------------------------------------------------------------------
# Kernel 1: tiled global average pool   (N, C, H, W) -> (N, C)
# --------------------------------------------------------------------------
def _avg_pool_kernel(x_ref, o_ref, *, inv_hw, hw, col_tile, mask_tail):
    k = pl.program_id(1)

    @pl.when(k == 0)
    def _():
        o_ref[...] = jnp.zeros_like(o_ref)

    xv = x_ref[...].astype(jnp.float32)
    if mask_tail:
        # cdiv grid: the last column block may extend past H*W; zero it out.
        col = k * col_tile + lax.broadcasted_iota(jnp.int32, xv.shape, 1)
        xv = jnp.where(col < hw, xv, 0.0)
    o_ref[...] += jnp.sum(xv, axis=1, keepdims=True)

    @pl.when(k == pl.num_programs(1) - 1)
    def _():
        o_ref[...] = o_ref[...] * inv_hw


def channel_avg_pool(x):
    """x: (N, C, H, W) -> per-channel mean (N, C), float32."""
    N, C, H, W = x.shape
    NC, HW = N * C, H * W
    x2 = x.reshape(NC, HW)                          # lane-dense minor dim

    itemsize = jnp.dtype(x.dtype).itemsize
    sub_q = max(8, 32 // itemsize)                  # dtype-aware sublane quantum

    # Row tile: divisor of NC, multiple of the sublane quantum; prefer >=2 row
    # blocks so the "parallel" axis feeds both TensorCores on v7x.
    row_cap = 512
    if NC // 2 >= sub_q:
        row_cap = min(row_cap, (NC // 2) // sub_q * sub_q)
    row_tile = _largest_divisor_tile(NC, sub_q, row_cap)

    # Column tile: multiple of 128, byte-capped so one input block is ~<=4 MiB
    # (double-buffered it stays well under v7x's 32 MiB scoped VMEM).
    target_bytes = 4 * 1024 * 1024
    max_cols = max(128, (target_bytes // (row_tile * itemsize)) // 128 * 128)
    if HW <= max_cols:
        col_tile = HW                               # full extent: always legal
    else:
        col_tile = _largest_divisor_tile(HW, 128, max_cols)
        if col_tile > max_cols:                     # no divisor -> cdiv + mask
            col_tile = max_cols
    n_col = pl.cdiv(HW, col_tile)
    mask_tail = (HW % col_tile) != 0

    grid = (NC // row_tile, n_col)

    z = pl.pallas_call(
        functools.partial(
            _avg_pool_kernel,
            inv_hw=1.0 / float(HW),
            hw=HW,
            col_tile=col_tile,
            mask_tail=mask_tail,
        ),
        out_shape=jax.ShapeDtypeStruct((NC, 1), jnp.float32),
        grid_spec=pltpu.PrefetchScalarGridSpec(
            num_scalar_prefetch=0,
            grid=grid,
            in_specs=[pl.BlockSpec((row_tile, col_tile), lambda i, k: (i, k))],
            out_specs=pl.BlockSpec((row_tile, 1), lambda i, k: (i, 0)),
        ),
        compiler_params=pltpu.CompilerParams(
            dimension_semantics=("parallel", "arbitrary"),
            vmem_limit_bytes=32 * 1024 * 1024,
        ),
    )(x2)
    return z.reshape(N, C)


# --------------------------------------------------------------------------
# Kernel 2: fc1 -> relu -> fc2 -> sigmoid   (tiny, MXU matmuls)
# --------------------------------------------------------------------------
def _fc_scores_kernel(z_ref, w1_ref, b1_ref, w2_ref, b2_ref, o_ref):
    z = z_ref[...].astype(jnp.float32)                          # (N, C)
    w1 = w1_ref[...].astype(jnp.float32)                        # (C2, C)
    w2 = w2_ref[...].astype(jnp.float32)                        # (C, C2)
    # Contract the in-feature dims directly (no transposed weight copies).
    h = lax.dot_general(z, w1, (((1,), (1,)), ((), ())),
                        preferred_element_type=jnp.float32) + b1_ref[...]
    h = jnp.maximum(h, 0.0)
    s = lax.dot_general(h, w2, (((1,), (1,)), ((), ())),
                        preferred_element_type=jnp.float32) + b2_ref[...]
    # Numerically stable sigmoid.
    e = jnp.exp(-jnp.abs(s))
    o_ref[...] = jnp.where(s >= 0.0, 1.0 / (1.0 + e), e / (1.0 + e))


def channel_scores_fc(z, w1, b1, w2, b2):
    N, C = z.shape
    vmem = pl.BlockSpec(memory_space=pltpu.MemorySpace.VMEM)
    return pl.pallas_call(
        _fc_scores_kernel,
        out_shape=jax.ShapeDtypeStruct((N, C), jnp.float32),
        in_specs=[vmem] * 5,
        out_specs=vmem,
    )(
        z,
        w1.astype(jnp.float32),                   # (C2, C), PyTorch layout
        b1.reshape(1, -1).astype(jnp.float32),
        w2.astype(jnp.float32),                   # (C, C2), PyTorch layout
        b2.reshape(1, -1).astype(jnp.float32),
    )


# --------------------------------------------------------------------------
# Kernel 3: fused channel gather (selected + remaining) via HBM->HBM DMA
# --------------------------------------------------------------------------
def _gather_dma_kernel(idx_ref, x_hbm, sel_hbm, rem_hbm, sem, *, rc, C, depth):
    n = pl.program_id(0)

    def phase(dst_hbm, dst_stride, idx_off, count):
        # Copy channel idx_ref[n, idx_off + s] -> dst row n*dst_stride + s,
        # keeping up to `depth` HBM->HBM DMAs in flight.
        def start(s):
            src_row = n * C + idx_ref[n, idx_off + s]
            pltpu.make_async_copy(
                x_hbm.at[src_row], dst_hbm.at[n * dst_stride + s],
                sem.at[s % depth]).start()

        def wait(s):
            # Reconstruct a same-shaped copy descriptor (src index is irrelevant
            # for the wait; it only needs the byte count + semaphore slot).
            pltpu.make_async_copy(
                x_hbm.at[n * C], dst_hbm.at[n * dst_stride + s],
                sem.at[s % depth]).wait()

        prime = min(depth, count)

        @pl.loop(0, prime)
        def _(s):
            start(s)

        @pl.loop(prime, count)
        def _(s):
            wait(s - depth)
            start(s)

        @pl.loop(max(count - depth, 0), count)
        def _(s):
            wait(s)

    phase(sel_hbm, rc, 0, rc)
    phase(rem_hbm, C - rc, rc, C - rc)


def channel_split_gather(x3, idx, rc):
    """x3: (N, C, HW); idx: (N, C) int32 permutation per row.

    Returns (selected (N, rc, HW), remaining (N, C-rc, HW))."""
    N, C, HW = x3.shape
    if rc <= 0 or rc >= C:
        # Degenerate split (one side empty): plain JAX gather, negligible cost.
        rows = jnp.arange(N)[:, None]
        return x3[rows, idx[:, :rc]], x3[rows, idx[:, rc:]]

    depth = 8                                     # DMA ring depth (in flight)
    x2 = x3.reshape(N * C, HW)
    sel2, rem2 = pl.pallas_call(
        functools.partial(_gather_dma_kernel, rc=rc, C=C, depth=depth),
        out_shape=(
            jax.ShapeDtypeStruct((N * rc, HW), x3.dtype),
            jax.ShapeDtypeStruct((N * (C - rc), HW), x3.dtype),
        ),
        grid_spec=pltpu.PrefetchScalarGridSpec(
            num_scalar_prefetch=1,
            grid=(N,),
            in_specs=[pl.BlockSpec(memory_space=pl.ANY)],
            out_specs=(
                pl.BlockSpec(memory_space=pl.ANY),
                pl.BlockSpec(memory_space=pl.ANY),
            ),
            scratch_shapes=[pltpu.SemaphoreType.DMA((depth,))],
        ),
        compiler_params=pltpu.CompilerParams(
            dimension_semantics=("arbitrary",),
        ),
    )(idx, x2)
    return sel2.reshape(N, rc, HW), rem2.reshape(N, C - rc, HW)


# --------------------------------------------------------------------------
# Module forward
# --------------------------------------------------------------------------
@functools.partial(jax.jit, static_argnames=("reduction_ratio",))
def channelenhance_forward(x, w1, b1, w2, b2, reduction_ratio=0.5):
    N, C, H, W = x.shape
    z = channel_avg_pool(x)                                   # (N, C)
    scores = channel_scores_fc(z, w1, b1, w2, b2)             # (N, C)
    # TODO(synk): descending sort stays in JAX glue (no clean Pallas TPU sort);
    # jnp.argsort is stable while torch.sort is not guaranteed stable on ties.
    indices = jnp.argsort(-scores, axis=1).astype(jnp.int32)
    rc = int(reduction_ratio * C)        # matches PyTorch's int() truncation
    x3 = x.reshape(N, C, H * W)
    sel3, rem3 = channel_split_gather(x3, indices, rc)
    return sel3.reshape(N, rc, H, W), rem3.reshape(N, C - rc, H, W)


# --------------------------------------------------------------------------
# Pure-JAX reference (correctness sanity check)
# --------------------------------------------------------------------------
def reference_forward(x, w1, b1, w2, b2, reduction_ratio=0.5):
    N, C, H, W = x.shape
    z = jnp.mean(x, axis=(2, 3))
    h = jnp.maximum(z @ w1.T + b1, 0.0)
    s = jax.nn.sigmoid(h @ w2.T + b2)
    idx = jnp.argsort(-s, axis=1)
    rc = int(reduction_ratio * C)
    take = lambda ids: jnp.take_along_axis(x, ids[:, :, None, None], axis=1)
    return take(idx[:, :rc]), take(idx[:, rc:])


if __name__ == "__main__":
    N, C, H, W = 2, 4, 16, 16
    C2 = C // 2

    key = jax.random.PRNGKey(0)
    kx, kw1, kb1, kw2, kb2 = jax.random.split(key, 5)

    x = jax.random.normal(kx, (N, C, H, W), dtype=jnp.float32)

    # Deterministic nn.Linear-style init (uniform in +-1/sqrt(fan_in)).
    bound1 = 1.0 / np.sqrt(C)
    w1 = jax.random.uniform(kw1, (C2, C), jnp.float32, -bound1, bound1)
    b1 = jax.random.uniform(kb1, (C2,), jnp.float32, -bound1, bound1)
    bound2 = 1.0 / np.sqrt(C2)
    w2 = jax.random.uniform(kw2, (C, C2), jnp.float32, -bound2, bound2)
    b2 = jax.random.uniform(kb2, (C,), jnp.float32, -bound2, bound2)

    sel, rem = channelenhance_forward(x, w1, b1, w2, b2, reduction_ratio=0.5)
    jax.block_until_ready((sel, rem))

    sel_ref, rem_ref = reference_forward(x, w1, b1, w2, b2, reduction_ratio=0.5)
    assert sel.shape == (N, C // 2, H, W) and rem.shape == (N, C - C // 2, H, W)
    np.testing.assert_allclose(np.asarray(sel), np.asarray(sel_ref), rtol=1e-5, atol=1e-5)
    np.testing.assert_allclose(np.asarray(rem), np.asarray(rem_ref), rtol=1e-5, atol=1e-5)

    print("KERNEL_OK")
</pallas_src>

<mosaic_0001>
module attributes {stable_mosaic.version = 11 : i64} {
  func.func @_avg_pool_kernel(%arg0: i32, %arg1: i32, %arg2: memref<8x256xf32, #tpu.memory_space<vmem>>, %arg3: memref<8x1xf32, #tpu.memory_space<vmem>>) attributes {dimension_semantics = [#tpu.dimension_semantics<parallel>, #tpu.dimension_semantics<arbitrary>], iteration_bounds = array<i64: 1, 1>, scalar_prefetch = 0 : i64, scratch_operands = 0 : i64, tpu.core_type = #tpu.core_type<tc>, window_params = [{transform_indices = @transform_0, window_bounds = array<i64: 8, 256>}, {transform_indices = @transform_1, window_bounds = array<i64: 8, 1>}]} {
    %c0_i32 = arith.constant 0 : i32
    %0 = arith.cmpi eq, %arg1, %c0_i32 : i32
    %1 = arith.extui %0 : i1 to i32
    %c0_i32_0 = arith.constant 0 : i32
    %2 = arith.cmpi ne, %1, %c0_i32_0 : i32
    scf.if %2 {
      %cst_8 = arith.constant 0.000000e+00 : f32
      %12 = vector.broadcast %cst_8 : f32 to vector<8x1xf32>
      %c0_9 = arith.constant 0 : index
      %c0_10 = arith.constant 0 : index
      %13 = vector.load %arg3[%c0_9, %c0_10] : memref<8x1xf32, #tpu.memory_space<vmem>>, vector<8x1xf32>
      tpu.vector_store %arg3[%c0_9, %c0_10], %12 {strides = array<i32>} : memref<8x1xf32, #tpu.memory_space<vmem>>, vector<8x1xf32>,
    } else {
    }
    %c0 = arith.constant 0 : index
    %c0_1 = arith.constant 0 : index
    %3 = vector.load %arg2[%c0, %c0_1] : memref<8x256xf32, #tpu.memory_space<vmem>>, vector<8x256xf32>
    %c0_2 = arith.constant 0 : index
    %c0_3 = arith.constant 0 : index
    %4 = vector.load %arg3[%c0_2, %c0_3] : memref<8x1xf32, #tpu.memory_space<vmem>>, vector<8x1xf32>
    %cst = arith.constant dense<0.000000e+00> : vector<8xf32>
    %5 = vector.multi_reduction <add>, %3, %cst [1] : vector<8x256xf32> to vector<8xf32>
    %6 = vector.shape_cast %5 : vector<8xf32> to vector<8x1xf32>
    %7 = arith.addf %4, %6 : vector<8x1xf32>
    %c0_4 = arith.constant 0 : index
    %c0_5 = arith.constant 0 : index
    %8 = vector.load %arg3[%c0_4, %c0_5] : memref<8x1xf32, #tpu.memory_space<vmem>>, vector<8x1xf32>
    tpu.vector_store %arg3[%c0_4, %c0_5], %7 {strides = array<i32>} : memref<8x1xf32, #tpu.memory_space<vmem>>, vector<8x1xf32>,
    %c0_i32_6 = arith.constant 0 : i32
    %9 = arith.cmpi eq, %arg1, %c0_i32_6 : i32
    %10 = arith.extui %9 : i1 to i32
    %c0_i32_7 = arith.constant 0 : i32
    %11 = arith.cmpi ne, %10, %c0_i32_7 : i32
    scf.if %11 {
      %c0_8 = arith.constant 0 : index
      %c0_9 = arith.constant 0 : index
      %12 = vector.load %arg3[%c0_8, %c0_9] : memref<8x1xf32, #tpu.memory_space<vmem>>, vector<8x1xf32>
      %cst_10 = arith.constant 3.906250e-03 : f32
      %13 = vector.broadcast %cst_10 : f32 to vector<8x1xf32>
      %14 = arith.mulf %12, %13 : vector<8x1xf32>
      %c0_11 = arith.constant 0 : index
      %c0_12 = arith.constant 0 : index
      %15 = vector.load %arg3[%c0_11, %c0_12] : memref<8x1xf32, #tpu.memory_space<vmem>>, vector<8x1xf32>
      tpu.vector_store %arg3[%c0_11, %c0_12], %14 {strides = array<i32>} : memref<8x1xf32, #tpu.memory_space<vmem>>, vector<8x1xf32>,
    } else {
    }
    return
  }
  func.func @transform_0(%arg0: i32, %arg1: i32) -> (i32, i32) {
    %c0_i32 = arith.constant 0 : i32
    return %arg0, %arg1 : i32, i32
  }
  func.func @transform_1(%arg0: i32, %arg1: i32) -> (i32, i32) {
    %c0_i32 = arith.constant 0 : i32
    %c0_i32_0 = arith.constant 0 : i32
    return %arg0, %c0_i32 : i32, i32
  }
}

module attributes {stable_mosaic.version = 11 : i64} {
  func.func @_fc_scores_kernel(%arg0: memref<2x4xf32, #tpu.memory_space<vmem>>, %arg1: memref<2x4xf32, #tpu.memory_space<vmem>>, %arg2: memref<1x2xf32, #tpu.memory_space<vmem>>, %arg3: memref<4x2xf32, #tpu.memory_space<vmem>>, %arg4: memref<1x4xf32, #tpu.memory_space<vmem>>, %arg5: memref<2x4xf32, #tpu.memory_space<vmem>>) attributes {dimension_semantics = [], scalar_prefetch = 0 : i64, scratch_operands = 0 : i64, tpu.core_type = #tpu.core_type<tc>} {
    %c0 = arith.constant 0 : index
    %c0_0 = arith.constant 0 : index
    %0 = vector.load %arg0[%c0, %c0_0] : memref<2x4xf32, #tpu.memory_space<vmem>>, vector<2x4xf32>
    %c0_1 = arith.constant 0 : index
    %c0_2 = arith.constant 0 : index
    %1 = vector.load %arg1[%c0_1, %c0_2] : memref<2x4xf32, #tpu.memory_space<vmem>>, vector<2x4xf32>
    %c0_3 = arith.constant 0 : index
    %c0_4 = arith.constant 0 : index
    %2 = vector.load %arg3[%c0_3, %c0_4] : memref<4x2xf32, #tpu.memory_space<vmem>>, vector<4x2xf32>
    %cst = arith.constant dense<0.000000e+00> : vector<2x2xf32>
    %3 = tpu.matmul %0, %1, %cst {dimension_numbers = #tpu.dot_dimension_numbers<[1], [1], [0], [0], [0, 0, 1, 0], [], []>} : vector<2x4xf32>, vector<2x4xf32>, vector<2x2xf32> -> vector<2x2xf32>
    %c0_5 = arith.constant 0 : index
    %c0_6 = arith.constant 0 : index
    %4 = vector.load %arg2[%c0_5, %c0_6] : memref<1x2xf32, #tpu.memory_space<vmem>>, vector<1x2xf32>
    %5 = vector.broadcast %4 : vector<1x2xf32> to vector<2x2xf32>
    %6 = arith.addf %3, %5 : vector<2x2xf32>
    %cst_7 = arith.constant 0.000000e+00 : f32
    %7 = vector.broadcast %cst_7 : f32 to vector<2x2xf32>
    %8 = arith.maximumf %6, %7 : vector<2x2xf32>
    %cst_8 = arith.constant dense<0.000000e+00> : vector<2x4xf32>
    %9 = tpu.matmul %8, %2, %cst_8 {dimension_numbers = #tpu.dot_dimension_numbers<[1], [1], [0], [0], [0, 0, 1, 0], [], []>} : vector<2x2xf32>, vector<4x2xf32>, vector<2x4xf32> -> vector<2x4xf32>
    %c0_9 = arith.constant 0 : index
    %c0_10 = arith.constant 0 : index
    %10 = vector.load %arg4[%c0_9, %c0_10] : memref<1x4xf32, #tpu.memory_space<vmem>>, vector<1x4xf32>
    %11 = vector.broadcast %10 : vector<1x4xf32> to vector<2x4xf32>
    %12 = arith.addf %9, %11 : vector<2x4xf32>
    %13 = math.absf %12 : vector<2x4xf32>
    %cst_11 = arith.constant 0.000000e+00 : f32
    %14 = vector.broadcast %cst_11 : f32 to vector<2x4xf32>
    %15 = arith.subf %14, %13 : vector<2x4xf32>
    %16 = math.exp %15 : vector<2x4xf32>
    %cst_12 = arith.constant 0.000000e+00 : f32
    %17 = vector.broadcast %cst_12 : f32 to vector<2x4xf32>
    %18 = arith.cmpf oge, %12, %17 : vector<2x4xf32>
    %cst_13 = arith.constant 1.000000e+00 : f32
    %19 = vector.broadcast %cst_13 : f32 to vector<2x4xf32>
    %20 = arith.addf %19, %16 : vector<2x4xf32>
    %cst_14 = arith.constant 1.000000e+00 : f32
    %21 = vector.broadcast %cst_14 : f32 to vector<2x4xf32>
    %22 = arith.divf %21, %20 : vector<2x4xf32>
    %cst_15 = arith.constant 1.000000e+00 : f32
    %23 = vector.broadcast %cst_15 : f32 to vector<2x4xf32>
    %24 = arith.addf %23, %16 : vector<2x4xf32>
    %25 = arith.divf %16, %24 : vector<2x4xf32>
    %26 = arith.select %18, %22, %25 : vector<2x4xi1>, vector<2x4xf32>
    %c0_16 = arith.constant 0 : index
    %c0_17 = arith.constant 0 : index
    %27 = vector.load %arg5[%c0_16, %c0_17] : memref<2x4xf32, #tpu.memory_space<vmem>>, vector<2x4xf32>
    tpu.vector_store %arg5[%c0_16, %c0_17], %26 {strides = array<i32>} : memref<2x4xf32, #tpu.memory_space<vmem>>, vector<2x4xf32>,
    return
  }
}

module attributes {stable_mosaic.version = 11 : i64} {
  func.func @_gather_dma_kernel(%arg0: i32, %arg1: memref<2x4xi32, #tpu.memory_space<smem>>, %arg2: memref<8x256xf32, #tpu.memory_space<any>>, %arg3: memref<4x256xf32, #tpu.memory_space<any>>, %arg4: memref<4x256xf32, #tpu.memory_space<any>>, %arg5: memref<8x!tpu.dma_semaphore, #tpu.memory_space<semaphore_mem>>) attributes {dimension_semantics = [#tpu.dimension_semantics<arbitrary>], iteration_bounds = array<i64: 2>, scalar_prefetch = 1 : i64, scratch_operands = 1 : i64, tpu.core_type = #tpu.core_type<tc>, window_params = [{}, {}, {}]} {
    %c0_i32 = arith.constant 0 : i32
    %c2_i32 = arith.constant 2 : i32
    %0 = arith.addi %c0_i32, %c2_i32 : i32
    %c1_i32 = arith.constant 1 : i32
    scf.for %arg6 = %c0_i32 to %0 step %c1_i32  : i32 {
      %c1_i32_21 = arith.constant 1 : i32
      %6 = arith.muli %arg6, %c1_i32_21 : i32
      %c0_i32_22 = arith.constant 0 : i32
      %7 = arith.addi %c0_i32_22, %6 : i32
      %c4_i32 = arith.constant 4 : i32
      %8 = arith.muli %arg0, %c4_i32 : i32
      %c0_i32_23 = arith.constant 0 : i32
      %9 = arith.addi %c0_i32_23, %7 : i32
      %10 = arith.index_cast %arg0 : i32 to index
      %11 = arith.index_cast %9 : i32 to index
      %12 = memref.load %arg1[%10, %11] : memref<2x4xi32, #tpu.memory_space<smem>>
      %13 = arith.addi %8, %12 : i32
      %c2_i32_24 = arith.constant 2 : i32
      %14 = arith.muli %arg0, %c2_i32_24 : i32
      %15 = arith.addi %14, %7 : i32
      %c8_i32 = arith.constant 8 : i32
      %c0_i32_25 = arith.constant 0 : i32
      %16 = arith.cmpi eq, %c8_i32, %c0_i32_25 : i32
      %c1_i32_26 = arith.constant 1 : i32
      %17 = arith.select %16, %c1_i32_26, %c8_i32 : i32
      %18 = arith.remsi %7, %17 : i32
      %c0_i32_27 = arith.constant 0 : i32
      %19 = arith.cmpi ne, %18, %c0_i32_27 : i32
      %c0_i32_28 = arith.constant 0 : i32
      %20 = arith.cmpi slt, %18, %c0_i32_28 : i32
      %c0_i32_29 = arith.constant 0 : i32
      %21 = arith.cmpi slt, %17, %c0_i32_29 : i32
      %22 = arith.xori %20, %21 : i1
      %23 = arith.andi %22, %19 : i1
      %24 = arith.addi %18, %17 : i32
      %25 = arith.select %23, %24, %18 : i32
      %c0_i32_30 = arith.constant 0 : i32
      %26 = tpu.memref_slice %arg2[%13, %c0_i32_30] : memref<8x256xf32, #tpu.memory_space<any>> -> memref<1x256xf32, #tpu.memory_space<any>>
      %27 = tpu.memref_squeeze %26 : memref<1x256xf32, #tpu.memory_space<any>> -> memref<256xf32, #tpu.memory_space<any>>
      %c0_i32_31 = arith.constant 0 : i32
      %28 = tpu.memref_slice %arg3[%15, %c0_i32_31] : memref<4x256xf32, #tpu.memory_space<any>> -> memref<1x256xf32, #tpu.memory_space<any>>
      %29 = tpu.memref_squeeze %28 : memref<1x256xf32, #tpu.memory_space<any>> -> memref<256xf32, #tpu.memory_space<any>>
      %30 = tpu.memref_slice %arg5[%25] : memref<8x!tpu.dma_semaphore, #tpu.memory_space<semaphore_mem>> -> memref<1x!tpu.dma_semaphore, #tpu.memory_space<semaphore_mem>>
      %31 = tpu.memref_squeeze %30 : memref<1x!tpu.dma_semaphore, #tpu.memory_space<semaphore_mem>> -> memref<!tpu.dma_semaphore, #tpu.memory_space<semaphore_mem>>
      tpu.enqueue_dma source(%27 : memref<256xf32, #tpu.memory_space<any>>) target(%29 : memref<256xf32, #tpu.memory_space<any>>) target_semaphore(%31 : memref<!tpu.dma_semaphore, #tpu.memory_space<semaphore_mem>>)
    }
    %c2_i32_0 = arith.constant 2 : i32
    %c0_i32_1 = arith.constant 0 : i32
    %c0_i32_2 = arith.constant 0 : i32
    %1 = arith.addi %c0_i32_1, %c0_i32_2 : i32
    %c1_i32_3 = arith.constant 1 : i32
    scf.for %arg6 = %c0_i32_1 to %1 step %c1_i32_3  : i32 {
      %c1_i32_21 = arith.constant 1 : i32
      %6 = arith.muli %arg6, %c1_i32_21 : i32
      %c2_i32_22 = arith.constant 2 : i32
      %7 = arith.addi %c2_i32_22, %6 : i32
      %c8_i32 = arith.constant 8 : i32
      %8 = arith.subi %7, %c8_i32 : i32
      %c4_i32 = arith.constant 4 : i32
      %9 = arith.muli %arg0, %c4_i32 : i32
      %c2_i32_23 = arith.constant 2 : i32
      %10 = arith.muli %arg0, %c2_i32_23 : i32
      %11 = arith.addi %10, %8 : i32
      %c8_i32_24 = arith.constant 8 : i32
      %c0_i32_25 = arith.constant 0 : i32
      %12 = arith.cmpi eq, %c8_i32_24, %c0_i32_25 : i32
      %c1_i32_26 = arith.constant 1 : i32
      %13 = arith.select %12, %c1_i32_26, %c8_i32_24 : i32
      %14 = arith.remsi %8, %13 : i32
      %c0_i32_27 = arith.constant 0 : i32
      %15 = arith.cmpi ne, %14, %c0_i32_27 : i32
      %c0_i32_28 = arith.constant 0 : i32
      %16 = arith.cmpi slt, %14, %c0_i32_28 : i32
      %c0_i32_29 = arith.constant 0 : i32
      %17 = arith.cmpi slt, %13, %c0_i32_29 : i32
      %18 = arith.xori %16, %17 : i1
      %19 = arith.andi %18, %15 : i1
      %20 = arith.addi %14, %13 : i32
      %21 = arith.select %19, %20, %14 : i32
      %c0_i32_30 = arith.constant 0 : i32
      %22 = tpu.memref_slice %arg2[%9, %c0_i32_30] : memref<8x256xf32, #tpu.memory_space<any>> -> memref<1x256xf32, #tpu.memory_space<any>>
      %23 = tpu.memref_squeeze %22 : memref<1x256xf32, #tpu.memory_space<any>> -> memref<256xf32, #tpu.memory_space<any>>
      %c0_i32_31 = arith.constant 0 : i32
      %24 = tpu.memref_slice %arg3[%11, %c0_i32_31] : memref<4x256xf32, #tpu.memory_space<any>> -> memref<1x256xf32, #tpu.memory_space<any>>
      %25 = tpu.memref_squeeze %24 : memref<1x256xf32, #tpu.memory_space<any>> -> memref<256xf32, #tpu.memory_space<any>>
      %26 = tpu.memref_slice %arg5[%21] : memref<8x!tpu.dma_semaphore, #tpu.memory_space<semaphore_mem>> -> memref<1x!tpu.dma_semaphore, #tpu.memory_space<semaphore_mem>>
      %27 = tpu.memref_squeeze %26 : memref<1x!tpu.dma_semaphore, #tpu.memory_space<semaphore_mem>> -> memref<!tpu.dma_semaphore, #tpu.memory_space<semaphore_mem>>
      tpu.wait_dma2 semaphore(%27 : memref<!tpu.dma_semaphore, #tpu.memory_space<semaphore_mem>>) src(%23 : memref<256xf32, #tpu.memory_space<any>>) dst(%25 : memref<256xf32, #tpu.memory_space<any>>)
      %c4_i32_32 = arith.constant 4 : i32
      %28 = arith.muli %arg0, %c4_i32_32 : i32
      %c0_i32_33 = arith.constant 0 : i32
      %29 = arith.addi %c0_i32_33, %7 : i32
      %30 = arith.index_cast %arg0 : i32 to index
      %31 = arith.index_cast %29 : i32 to index
      %32 = memref.load %arg1[%30, %31] : memref<2x4xi32, #tpu.memory_space<smem>>
      %33 = arith.addi %28, %32 : i32
      %c2_i32_34 = arith.constant 2 : i32
      %34 = arith.muli %arg0, %c2_i32_34 : i32
      %35 = arith.addi %34, %7 : i32
      %c8_i32_35 = arith.constant 8 : i32
      %c0_i32_36 = arith.constant 0 : i32
      %36 = arith.cmpi eq, %c8_i32_35, %c0_i32_36 : i32
      %c1_i32_37 = arith.constant 1 : i32
      %37 = arith.select %36, %c1_i32_37, %c8_i32_35 : i32
      %38 = arith.remsi %7, %37 : i32
      %c0_i32_38 = arith.constant 0 : i32
      %39 = arith.cmpi ne, %38, %c0_i32_38 : i32
      %c0_i32_39 = arith.constant 0 : i32
      %40 = arith.cmpi slt, %38, %c0_i32_39 : i32
      %c0_i32_40 = arith.constant 0 : i32
      %41 = arith.cmpi slt, %37, %c0_i32_40 : i32
      %42 = arith.xori %40, %41 : i1
      %43 = arith.andi %42, %39 : i1
      %44 = arith.addi %38, %37 : i32
      %45 = arith.select %43, %44, %38 : i32
      %c0_i32_41 = arith.constant 0 : i32
      %46 = tpu.memref_slice %arg2[%33, %c0_i32_41] : memref<8x256xf32, #tpu.memory_space<any>> -> memref<1x256xf32, #tpu.memory_space<any>>
      %47 = tpu.memref_squeeze %46 : memref<1x256xf32, #tpu.memory_space<any>> -> memref<256xf32, #tpu.memory_space<any>>
      %c0_i32_42 = arith.constant 0 : i32
      %48 = tpu.memref_slice %arg3[%35, %c0_i32_42] : memref<4x256xf32, #tpu.memory_space<any>> -> memref<1x256xf32, #tpu.memory_space<any>>
      %49 = tpu.memref_squeeze %48 : memref<1x256xf32, #tpu.memory_space<any>> -> memref<256xf32, #tpu.memory_space<any>>
      %50 = tpu.memref_slice %arg5[%45] : memref<8x!tpu.dma_semaphore, #tpu.memory_space<semaphore_mem>> -> memref<1x!tpu.dma_semaphore, #tpu.memory_space<semaphore_mem>>
      %51 = tpu.memref_squeeze %50 : memref<1x!tpu.dma_semaphore, #tpu.memory_space<semaphore_mem>> -> memref<!tpu.dma_semaphore, #tpu.memory_space<semaphore_mem>>
      tpu.enqueue_dma source(%47 : memref<256xf32, #tpu.memory_space<any>>) target(%49 : memref<256xf32, #tpu.memory_space<any>>) target_semaphore(%51 : memref<!tpu.dma_semaphore, #tpu.memory_space<semaphore_mem>>)
    }
    %c0_i32_4 = arith.constant 0 : i32
    %c0_i32_5 = arith.constant 0 : i32
    %c2_i32_6 = arith.constant 2 : i32
    %2 = arith.addi %c0_i32_5, %c2_i32_6 : i32
    %c1_i32_7 = arith.constant 1 : i32
    scf.for %arg6 = %c0_i32_5 to %2 step %c1_i32_7  : i32 {
      %c1_i32_21 = arith.constant 1 : i32
      %6 = arith.muli %arg6, %c1_i32_21 : i32
      %c0_i32_22 = arith.constant 0 : i32
      %7 = arith.addi %c0_i32_22, %6 : i32
      %c4_i32 = arith.constant 4 : i32
      %8 = arith.muli %arg0, %c4_i32 : i32
      %c2_i32_23 = arith.constant 2 : i32
      %9 = arith.muli %arg0, %c2_i32_23 : i32
      %10 = arith.addi %9, %7 : i32
      %c8_i32 = arith.constant 8 : i32
      %c0_i32_24 = arith.constant 0 : i32
      %11 = arith.cmpi eq, %c8_i32, %c0_i32_24 : i32
      %c1_i32_25 = arith.constant 1 : i32
      %12 = arith.select %11, %c1_i32_25, %c8_i32 : i32
      %13 = arith.remsi %7, %12 : i32
      %c0_i32_26 = arith.constant 0 : i32
      %14 = arith.cmpi ne, %13, %c0_i32_26 : i32
      %c0_i32_27 = arith.constant 0 : i32
      %15 = arith.cmpi slt, %13, %c0_i32_27 : i32
      %c0_i32_28 = arith.constant 0 : i32
      %16 = arith.cmpi slt, %12, %c0_i32_28 : i32
      %17 = arith.xori %15, %16 : i1
      %18 = arith.andi %17, %14 : i1
      %19 = arith.addi %13, %12 : i32
      %20 = arith.select %18, %19, %13 : i32
      %c0_i32_29 = arith.constant 0 : i32
      %21 = tpu.memref_slice %arg2[%8, %c0_i32_29] : memref<8x256xf32, #tpu.memory_space<any>> -> memref<1x256xf32, #tpu.memory_space<any>>
      %22 = tpu.memref_squeeze %21 : memref<1x256xf32, #tpu.memory_space<any>> -> memref<256xf32, #tpu.memory_space<any>>
      %c0_i32_30 = arith.constant 0 : i32
      %23 = tpu.memref_slice %arg3[%10, %c0_i32_30] : memref<4x256xf32, #tpu.memory_space<any>> -> memref<1x256xf32, #tpu.memory_space<any>>
      %24 = tpu.memref_squeeze %23 : memref<1x256xf32, #tpu.memory_space<any>> -> memref<256xf32, #tpu.memory_space<any>>
      %25 = tpu.memref_slice %arg5[%20] : memref<8x!tpu.dma_semaphore, #tpu.memory_space<semaphore_mem>> -> memref<1x!tpu.dma_semaphore, #tpu.memory_space<semaphore_mem>>
      %26 = tpu.memref_squeeze %25 : memref<1x!tpu.dma_semaphore, #tpu.memory_space<semaphore_mem>> -> memref<!tpu.dma_semaphore, #tpu.memory_space<semaphore_mem>>
      tpu.wait_dma2 semaphore(%26 : memref<!tpu.dma_semaphore, #tpu.memory_space<semaphore_mem>>) src(%22 : memref<256xf32, #tpu.memory_space<any>>) dst(%24 : memref<256xf32, #tpu.memory_space<any>>)
    }
    %c2_i32_8 = arith.constant 2 : i32
    %c0_i32_9 = arith.constant 0 : i32
    %c2_i32_10 = arith.constant 2 : i32
    %3 = arith.addi %c0_i32_9, %c2_i32_10 : i32
    %c1_i32_11 = arith.constant 1 : i32
    scf.for %arg6 = %c0_i32_9 to %3 step %c1_i32_11  : i32 {
      %c1_i32_21 = arith.constant 1 : i32
      %6 = arith.muli %arg6, %c1_i32_21 : i32
      %c0_i32_22 = arith.constant 0 : i32
      %7 = arith.addi %c0_i32_22, %6 : i32
      %c4_i32 = arith.constant 4 : i32
      %8 = arith.muli %arg0, %c4_i32 : i32
      %c2_i32_23 = arith.constant 2 : i32
      %9 = arith.addi %c2_i32_23, %7 : i32
      %10 = arith.index_cast %arg0 : i32 to index
      %11 = arith.index_cast %9 : i32 to index
      %12 = memref.load %arg1[%10, %11] : memref<2x4xi32, #tpu.memory_space<smem>>
      %13 = arith.addi %8, %12 : i32
      %c2_i32_24 = arith.constant 2 : i32
      %14 = arith.muli %arg0, %c2_i32_24 : i32
      %15 = arith.addi %14, %7 : i32
      %c8_i32 = arith.constant 8 : i32
      %c0_i32_25 = arith.constant 0 : i32
      %16 = arith.cmpi eq, %c8_i32, %c0_i32_25 : i32
      %c1_i32_26 = arith.constant 1 : i32
      %17 = arith.select %16, %c1_i32_26, %c8_i32 : i32
      %18 = arith.remsi %7, %17 : i32
      %c0_i32_27 = arith.constant 0 : i32
      %19 = arith.cmpi ne, %18, %c0_i32_27 : i32
      %c0_i32_28 = arith.constant 0 : i32
      %20 = arith.cmpi slt, %18, %c0_i32_28 : i32
      %c0_i32_29 = arith.constant 0 : i32
      %21 = arith.cmpi slt, %17, %c0_i32_29 : i32
      %22 = arith.xori %20, %21 : i1
      %23 = arith.andi %22, %19 : i1
      %24 = arith.addi %18, %17 : i32
      %25 = arith.select %23, %24, %18 : i32
      %c0_i32_30 = arith.constant 0 : i32
      %26 = tpu.memref_slice %arg2[%13, %c0_i32_30] : memref<8x256xf32, #tpu.memory_space<any>> -> memref<1x256xf32, #tpu.memory_space<any>>
      %27 = tpu.memref_squeeze %26 : memref<1x256xf32, #tpu.memory_space<any>> -> memref<256xf32, #tpu.memory_space<any>>
      %c0_i32_31 = arith.constant 0 : i32
      %28 = tpu.memref_slice %arg4[%15, %c0_i32_31] : memref<4x256xf32, #tpu.memory_space<any>> -> memref<1x256xf32, #tpu.memory_space<any>>
      %29 = tpu.memref_squeeze %28 : memref<1x256xf32, #tpu.memory_space<any>> -> memref<256xf32, #tpu.memory_space<any>>
      %30 = tpu.memref_slice %arg5[%25] : memref<8x!tpu.dma_semaphore, #tpu.memory_space<semaphore_mem>> -> memref<1x!tpu.dma_semaphore, #tpu.memory_space<semaphore_mem>>
      %31 = tpu.memref_squeeze %30 : memref<1x!tpu.dma_semaphore, #tpu.memory_space<semaphore_mem>> -> memref<!tpu.dma_semaphore, #tpu.memory_space<semaphore_mem>>
      tpu.enqueue_dma source(%27 : memref<256xf32, #tpu.memory_space<any>>) target(%29 : memref<256xf32, #tpu.memory_space<any>>) target_semaphore(%31 : memref<!tpu.dma_semaphore, #tpu.memory_space<semaphore_mem>>)
    }
    %c2_i32_12 = arith.constant 2 : i32
    %c0_i32_13 = arith.constant 0 : i32
    %c0_i32_14 = arith.constant 0 : i32
    %4 = arith.addi %c0_i32_13, %c0_i32_14 : i32
    %c1_i32_15 = arith.constant 1 : i32
    scf.for %arg6 = %c0_i32_13 to %4 step %c1_i32_15  : i32 {
      %c1_i32_21 = arith.constant 1 : i32
      %6 = arith.muli %arg6, %c1_i32_21 : i32
      %c2_i32_22 = arith.constant 2 : i32
      %7 = arith.addi %c2_i32_22, %6 : i32
      %c8_i32 = arith.constant 8 : i32
      %8 = arith.subi %7, %c8_i32 : i32
      %c4_i32 = arith.constant 4 : i32
      %9 = arith.muli %arg0, %c4_i32 : i32
      %c2_i32_23 = arith.constant 2 : i32
      %10 = arith.muli %arg0, %c2_i32_23 : i32
      %11 = arith.addi %10, %8 : i32
      %c8_i32_24 = arith.constant 8 : i32
      %c0_i32_25 = arith.constant 0 : i32
      %12 = arith.cmpi eq, %c8_i32_24, %c0_i32_25 : i32
      %c1_i32_26 = arith.constant 1 : i32
      %13 = arith.select %12, %c1_i32_26, %c8_i32_24 : i32
      %14 = arith.remsi %8, %13 : i32
      %c0_i32_27 = arith.constant 0 : i32
      %15 = arith.cmpi ne, %14, %c0_i32_27 : i32
      %c0_i32_28 = arith.constant 0 : i32
      %16 = arith.cmpi slt, %14, %c0_i32_28 : i32
      %c0_i32_29 = arith.constant 0 : i32
      %17 = arith.cmpi slt, %13, %c0_i32_29 : i32
      %18 = arith.xori %16, %17 : i1
      %19 = arith.andi %18, %15 : i1
      %20 = arith.addi %14, %13 : i32
      %21 = arith.select %19, %20, %14 : i32
      %c0_i32_30 = arith.constant 0 : i32
      %22 = tpu.memref_slice %arg2[%9, %c0_i32_30] : memref<8x256xf32, #tpu.memory_space<any>> -> memref<1x256xf32, #tpu.memory_space<any>>
      %23 = tpu.memref_squeeze %22 : memref<1x256xf32, #tpu.memory_space<any>> -> memref<256xf32, #tpu.memory_space<any>>
      %c0_i32_31 = arith.constant 0 : i32
      %24 = tpu.memref_slice %arg4[%11, %c0_i32_31] : memref<4x256xf32, #tpu.memory_space<any>> -> memref<1x256xf32, #tpu.memory_space<any>>
      %25 = tpu.memref_squeeze %24 : memref<1x256xf32, #tpu.memory_space<any>> -> memref<256xf32, #tpu.memory_space<any>>
      %26 = tpu.memref_slice %arg5[%21] : memref<8x!tpu.dma_semaphore, #tpu.memory_space<semaphore_mem>> -> memref<1x!tpu.dma_semaphore, #tpu.memory_space<semaphore_mem>>
      %27 = tpu.memref_squeeze %26 : memref<1x!tpu.dma_semaphore, #tpu.memory_space<semaphore_mem>> -> memref<!tpu.dma_semaphore, #tpu.memory_space<semaphore_mem>>
      tpu.wait_dma2 semaphore(%27 : memref<!tpu.dma_semaphore, #tpu.memory_space<semaphore_mem>>) src(%23 : memref<256xf32, #tpu.memory_space<any>>) dst(%25 : memref<256xf32, #tpu.memory_space<any>>)
      %c4_i32_32 = arith.constant 4 : i32
      %28 = arith.muli %arg0, %c4_i32_32 : i32
      %c2_i32_33 = arith.constant 2 : i32
      %29 = arith.addi %c2_i32_33, %7 : i32
      %30 = arith.index_cast %arg0 : i32 to index
      %31 = arith.index_cast %29 : i32 to index
      %32 = memref.load %arg1[%30, %31] : memref<2x4xi32, #tpu.memory_space<smem>>
      %33 = arith.addi %28, %32 : i32
      %c2_i32_34 = arith.constant 2 : i32
      %34 = arith.muli %arg0, %c2_i32_34 : i32
      %35 = arith.addi %34, %7 : i32
      %c8_i32_35 = arith.constant 8 : i32
      %c0_i32_36 = arith.constant 0 : i32
      %36 = arith.cmpi eq, %c8_i32_35, %c0_i32_36 : i32
      %c1_i32_37 = arith.constant 1 : i32
      %37 = arith.select %36, %c1_i32_37, %c8_i32_35 : i32
      %38 = arith.remsi %7, %37 : i32
      %c0_i32_38 = arith.constant 0 : i32
      %39 = arith.cmpi ne, %38, %c0_i32_38 : i32
      %c0_i32_39 = arith.constant 0 : i32
      %40 = arith.cmpi slt, %38, %c0_i32_39 : i32
      %c0_i32_40 = arith.constant 0 : i32
      %41 = arith.cmpi slt, %37, %c0_i32_40 : i32
      %42 = arith.xori %40, %41 : i1
      %43 = arith.andi %42, %39 : i1
      %44 = arith.addi %38, %37 : i32
      %45 = arith.select %43, %44, %38 : i32
      %c0_i32_41 = arith.constant 0 : i32
      %46 = tpu.memref_slice %arg2[%33, %c0_i32_41] : memref<8x256xf32, #tpu.memory_space<any>> -> memref<1x256xf32, #tpu.memory_space<any>>
      %47 = tpu.memref_squeeze %46 : memref<1x256xf32, #tpu.memory_space<any>> -> memref<256xf32, #tpu.memory_space<any>>
      %c0_i32_42 = arith.constant 0 : i32
      %48 = tpu.memref_slice %arg4[%35, %c0_i32_42] : memref<4x256xf32, #tpu.memory_space<any>> -> memref<1x256xf32, #tpu.memory_space<any>>
      %49 = tpu.memref_squeeze %48 : memref<1x256xf32, #tpu.memory_space<any>> -> memref<256xf32, #tpu.memory_space<any>>
      %50 = tpu.memref_slice %arg5[%45] : memref<8x!tpu.dma_semaphore, #tpu.memory_space<semaphore_mem>> -> memref<1x!tpu.dma_semaphore, #tpu.memory_space<semaphore_mem>>
      %51 = tpu.memref_squeeze %50 : memref<1x!tpu.dma_semaphore, #tpu.memory_space<semaphore_mem>> -> memref<!tpu.dma_semaphore, #tpu.memory_space<semaphore_mem>>
      tpu.enqueue_dma source(%47 : memref<256xf32, #tpu.memory_space<any>>) target(%49 : memref<256xf32, #tpu.memory_space<any>>) target_semaphore(%51 : memref<!tpu.dma_semaphore, #tpu.memory_space<semaphore_mem>>)
    }
    %c0_i32_16 = arith.constant 0 : i32
    %c0_i32_17 = arith.constant 0 : i32
    %c2_i32_18 = arith.constant 2 : i32
    %5 = arith.addi %c0_i32_17, %c2_i32_18 : i32
    %c1_i32_19 = arith.constant 1 : i32
    scf.for %arg6 = %c0_i32_17 to %5 step %c1_i32_19  : i32 {
      %c1_i32_21 = arith.constant 1 : i32
      %6 = arith.muli %arg6, %c1_i32_21 : i32
      %c0_i32_22 = arith.constant 0 : i32
      %7 = arith.addi %c0_i32_22, %6 : i32
      %c4_i32 = arith.constant 4 : i32
      %8 = arith.muli %arg0, %c4_i32 : i32
      %c2_i32_23 = arith.constant 2 : i32
      %9 = arith.muli %arg0, %c2_i32_23 : i32
      %10 = arith.addi %9, %7 : i32
      %c8_i32 = arith.constant 8 : i32
      %c0_i32_24 = arith.constant 0 : i32
      %11 = arith.cmpi eq, %c8_i32, %c0_i32_24 : i32
      %c1_i32_25 = arith.constant 1 : i32
      %12 = arith.select %11, %c1_i32_25, %c8_i32 : i32
      %13 = arith.remsi %7, %12 : i32
      %c0_i32_26 = arith.constant 0 : i32
      %14 = arith.cmpi ne, %13, %c0_i32_26 : i32
      %c0_i32_27 = arith.constant 0 : i32
      %15 = arith.cmpi slt, %13, %c0_i32_27 : i32
      %c0_i32_28 = arith.constant 0 : i32
      %16 = arith.cmpi slt, %12, %c0_i32_28 : i32
      %17 = arith.xori %15, %16 : i1
      %18 = arith.andi %17, %14 : i1
      %19 = arith.addi %13, %12 : i32
      %20 = arith.select %18, %19, %13 : i32
      %c0_i32_29 = arith.constant 0 : i32
      %21 = tpu.memref_slice %arg2[%8, %c0_i32_29] : memref<8x256xf32, #tpu.memory_space<any>> -> memref<1x256xf32, #tpu.memory_space<any>>
      %22 = tpu.memref_squeeze %21 : memref<1x256xf32, #tpu.memory_space<any>> -> memref<256xf32, #tpu.memory_space<any>>
      %c0_i32_30 = arith.constant 0 : i32
      %23 = tpu.memref_slice %arg4[%10, %c0_i32_30] : memref<4x256xf32, #tpu.memory_space<any>> -> memref<1x256xf32, #tpu.memory_space<any>>
      %24 = tpu.memref_squeeze %23 : memref<1x256xf32, #tpu.memory_space<any>> -> memref<256xf32, #tpu.memory_space<any>>
      %25 = tpu.memref_slice %arg5[%20] : memref<8x!tpu.dma_semaphore, #tpu.memory_space<semaphore_mem>> -> memref<1x!tpu.dma_semaphore, #tpu.memory_space<semaphore_mem>>
      %26 = tpu.memref_squeeze %25 : memref<1x!tpu.dma_semaphore, #tpu.memory_space<semaphore_mem>> -> memref<!tpu.dma_semaphore, #tpu.memory_space<semaphore_mem>>
      tpu.wait_dma2 semaphore(%26 : memref<!tpu.dma_semaphore, #tpu.memory_space<semaphore_mem>>) src(%22 : memref<256xf32, #tpu.memory_space<any>>) dst(%24 : memref<256xf32, #tpu.memory_space<any>>)
    }
    %c2_i32_20 = arith.constant 2 : i32
    return
  }
}

</mosaic_0001>

<llo_original>
// kernel: neg.1
$region0: #{neg.1}
  #allocation0 [shape = 's32[1]{0}', space=sflag, size = 0x4, scoped, tag = 'scoped memory for neg.1']
  %s0 = inlined_call_operand.vmem [shape: f32[2,4], index: 0, kind: input, shape index: {}]
  %s1 = inlined_call_operand.vmem [shape: f32[2,4], index: 1, kind: output, shape index: {}]
  %v2 = vld [vmem:[%s0] sm:$0x3]
  %3 = xla_tuple %v2
  %4 = xla_tuple %3
  %v5 = vxor.u32 %v2, 2147483648
  %6 = xla_tuple %v5
  %7 = vst [vmem:[%s1] sm:$0x3] %v5

// kernel: channelenhance_forward.3
$region0: #{channelenhance_forward.3}
  #allocation0 [shape = 'u32[]', space=smem, size = 0x4, offset = 0x4, fixed_abs, tag = 'smem constant byte address 0x4 - core index']
  #allocation1 [shape = 'u32[144,128]{1,0:T(1,128)}', space=vmem, size = 0x12000, scoped, tag = 'internal scratch']
  %s0 = inlined_call_operand.vmem [shape: f32[8,256], index: 0, kind: input, shape index: {}]
  %s1 = inlined_call_operand.vmem [shape: f32[8,1], index: 1, kind: output, shape index: {}]
  %s2 = sld [smem:[#allocation0]]
  $region22: #{channelenhance_forward.3} parent=0
    _
  %s4 = ssub.s32 1, %s2
  %s5 = scalar_select 0, %s4, %s2
  // Predicated region
  $region2: #{channelenhance_forward.3} parent=0 // pred_check
    _
  $region3: #{channelenhance_forward.3} parent=0 // pred_check_branch
    %7 = sbr.rel (0) target = $region5
  $region4: #{channelenhance_forward.3} parent=0 // pred_region
    _
  $region5: #{channelenhance_forward.3} parent=0 // pred_fallthru
    _
  %p8 = scmp.eq.s32.totalorder 0, 0
  // Predicated region
  $region6: #{channelenhance_forward.3} parent=0 // pred_check
    %p9 = pneg %p8
  $region7: #{channelenhance_forward.3} parent=0 // pred_check_branch
    %11 = sbr.rel (%p9) target = $region9
  $region8: #{channelenhance_forward.3} parent=0 // pred_region
    %vm12 = vcmask 7168
    %13 = vst.msk [vmem:[%s1] sm:$0xff] %vm12, 0.0
  $region9: #{channelenhance_forward.3} parent=0 // pred_fallthru
    _
  %v14 = vld [vmem:[%s0] sm:$0xff]
  %v15 = vld [vmem:[%s0 + $0x8] sm:$0xff]
  %v16 = vld [vmem:[%s1] sm:$0xff]
  %v17 = vadd.f32 %v14, %v15
  %18 = vadd.xlane.f32.xlu0 %v17
  %v19 = vpop.xlane.xlu0 %18
  %v20 = vadd.f32 %v16, %v19
  %vm21 = vcmask 7168
  %22 = vst.msk [vmem:[%s1] sm:$0xff] %vm21, %v20
  // Predicated region
  $region10: #{channelenhance_forward.3} parent=0 // pred_check
    %p23 = pneg %p8
  $region11: #{channelenhance_forward.3} parent=0 // pred_check_branch
    %25 = sbr.rel (%p23) target = $region13
  $region12: #{channelenhance_forward.3} parent=0 // pred_region
    %v26 = vld [vmem:[%s1] sm:$0xff]
    %v27 = vmul.f32 %v26, 0.00390625
    %28 = vst.msk [vmem:[%s1] sm:$0xff] %vm21, %v27
  $region13: #{channelenhance_forward.3} parent=0 // pred_fallthru
    _
  // Predicated region
  $region14: #{channelenhance_forward.3} parent=0 // pred_check
    _
  $region15: #{channelenhance_forward.3} parent=0 // pred_check_branch
    %30 = sbr.rel (0) target = $region17
  $region16: #{channelenhance_forward.3} parent=0 // pred_region
    _
  $region17: #{channelenhance_forward.3} parent=0 // pred_fallthru
    _
  // Predicated region
  $region18: #{channelenhance_forward.3} parent=0 // pred_check
    _
  $region19: #{channelenhance_forward.3} parent=0 // pred_check_branch
    %32 = sbr.rel (0) target = $region21
  $region20: #{channelenhance_forward.3} parent=0 // pred_region
    _
  $region21: #{channelenhance_forward.3} parent=0 // pred_fallthru
    _

// kernel: channelenhance_forward.4
$region0: #{channelenhance_forward.4}
  #allocation0 [shape = 'u32[]', space=smem, size = 0x4, offset = 0x4, fixed_abs, tag = 'smem constant byte address 0x4 - core index']
  #allocation1 [shape = 'u32[144,128]{1,0:T(1,128)}', space=vmem, size = 0x12000, scoped, tag = 'internal scratch']
  %s0 = inlined_call_operand.vmem [shape: f32[2,4], index: 0, kind: input, shape index: {}]
  %s1 = inlined_call_operand.vmem [shape: f32[2,4], index: 1, kind: input, shape index: {}]
  %s2 = inlined_call_operand.vmem [shape: f32[1,2], index: 2, kind: input, shape index: {}]
  %s3 = inlined_call_operand.vmem [shape: f32[4,2], index: 3, kind: input, shape index: {}]
  %s4 = inlined_call_operand.vmem [shape: f32[1,4], index: 4, kind: input, shape index: {}]
  %s5 = inlined_call_operand.vmem [shape: f32[2,4], index: 5, kind: output, shape index: {}]
  %s6 = sld [smem:[#allocation0]]
  $region30: #{channelenhance_forward.4} parent=0
    _
  %s8 = ssub.s32 1, %s6
  %s9 = scalar_select 0, %s8, %s6
  // Predicated region
  $region2: #{channelenhance_forward.4} parent=0 // pred_check
    _
  $region3: #{channelenhance_forward.4} parent=0 // pred_check_branch
    %11 = sbr.rel (0) target = $region5
  $region4: #{channelenhance_forward.4} parent=0 // pred_region
    _
  $region5: #{channelenhance_forward.4} parent=0 // pred_fallthru
    _
  // Predicated region
  $region6: #{channelenhance_forward.4} parent=0 // pred_check
    _
  $region7: #{channelenhance_forward.4} parent=0 // pred_check_branch
    %13 = sbr.rel (0) target = $region9
  $region8: #{channelenhance_forward.4} parent=0 // pred_region
    _
  $region9: #{channelenhance_forward.4} parent=0 // pred_fallthru
    _
  // Predicated region
  $region10: #{channelenhance_forward.4} parent=0 // pred_check
    _
  $region11: #{channelenhance_forward.4} parent=0 // pred_check_branch
    %15 = sbr.rel (0) target = $region13
  $region12: #{channelenhance_forward.4} parent=0 // pred_region
    _
  $region13: #{channelenhance_forward.4} parent=0 // pred_fallthru
    _
  // Predicated region
  $region14: #{channelenhance_forward.4} parent=0 // pred_check
    _
  $region15: #{channelenhance_forward.4} parent=0 // pred_check_branch
    %17 = sbr.rel (0) target = $region17
  $region16: #{channelenhance_forward.4} parent=0 // pred_region
    _
  $region17: #{channelenhance_forward.4} parent=0 // pred_fallthru
    _
  // Predicated region
  $region18: #{channelenhance_forward.4} parent=0 // pred_check
    _
  $region19: #{channelenhance_forward.4} parent=0 // pred_check_branch
    %19 = sbr.rel (0) target = $region21
  $region20: #{channelenhance_forward.4} parent=0 // pred_region
    _
  $region21: #{channelenhance_forward.4} parent=0 // pred_fallthru
    _
  %v20 = vld [vmem:[%s0] sm:$0x3]
  %v21 = vld [vmem:[%s1] sm:$0x3]
  %v22 = vld [vmem:[%s3] sm:$0xf]
  %v23 = vld [vmem:[%s2] sm:$0x1]
  %v25 = vlaneseq
  %v26 = vshrl.u32 %v25, 7
  %v27 = vsub.s32 0, %v26
  %v28 = vrot.slane %v23, %v27
  %vm30 = vcmask 31744
  %v32 = vsel %vm30, %v20, 0
  %v35 = vsel %vm30, %v21, 0
  %37 = vmatprep.subr.mxu0 0.0
  %38 = vmatpush1.xpose.msra.mxu0 0.0
  %39 = vmatprep.subr.mxu0 0.0
  %40 = vmatpush1.xpose.msra.mxu0 0.0
  %41 = vmatprep.subr.mxu0 0.0
  %42 = vmatpush1.xpose.msra.mxu0 0.0
  %43 = vmatprep.subr.mxu0 0.0
  %44 = vmatpush1.xpose.msra.mxu0 0.0
  %45 = vmatprep.subr.mxu0 0.0
  %46 = vmatpush1.xpose.msra.mxu0 0.0
  %47 = vmatprep.subr.mxu0 0.0
  %48 = vmatpush1.xpose.msra.mxu0 0.0
  %49 = vmatprep.subr.mxu0 0.0
  %50 = vmatpush1.xpose.msra.mxu0 0.0
  %51 = vmatprep.subr.mxu0 0.0
  %52 = vmatpush1.xpose.msra.mxu0 0.0
  %53 = vmatprep.subr.mxu0 0.0
  %54 = vmatpush1.xpose.msra.mxu0 0.0
  %55 = vmatprep.subr.mxu0 0.0
  %56 = vmatpush1.xpose.msra.mxu0 0.0
  %57 = vmatprep.subr.mxu0 0.0
  %58 = vmatpush1.xpose.msra.mxu0 0.0
  %59 = vmatprep.subr.mxu0 0.0
  %60 = vmatpush1.xpose.msra.mxu0 0.0
  %61 = vmatprep.subr.mxu0 0.0
  %62 = vmatpush1.xpose.msra.mxu0 0.0
  %63 = vmatprep.subr.mxu0 0.0
  %64 = vmatpush1.xpose.msra.mxu0 0.0
  %65 = vmatprep.subr.mxu0 0.0
  %66 = vmatpush1.xpose.msra.mxu0 0.0
  %67 = vmatprep.subr.mxu0 0.0
  %68 = vmatpush1.xpose.msra.mxu0 %v35
  %69 = vmatprep.subr.mxu0 0.0
  %70 = vmatpush2.xpose.msra.mxu0 0.0
  %71 = vmatprep.subr.mxu0 0.0
  %72 = vmatpush2.xpose.msra.mxu0 0.0
  %73 = vmatprep.subr.mxu0 0.0
  %74 = vmatpush2.xpose.msra.mxu0 0.0
  %75 = vmatprep.subr.mxu0 0.0
  %76 = vmatpush2.xpose.msra.mxu0 0.0
  %77 = vmatprep.subr.mxu0 0.0
  %78 = vmatpush2.xpose.msra.mxu0 0.0
  %79 = vmatprep.subr.mxu0 0.0
  %80 = vmatpush2.xpose.msra.mxu0 0.0
  %81 = vmatprep.subr.mxu0 0.0
  %82 = vmatpush2.xpose.msra.mxu0 0.0
  %83 = vmatprep.subr.mxu0 0.0
  %84 = vmatpush2.xpose.msra.mxu0 0.0
  %85 = vmatprep.subr.mxu0 0.0
  %86 = vmatpush2.xpose.msra.mxu0 0.0
  %87 = vmatprep.subr.mxu0 0.0
  %88 = vmatpush2.xpose.msra.mxu0 0.0
  %89 = vmatprep.subr.mxu0 0.0
  %90 = vmatpush2.xpose.msra.mxu0 0.0
  %91 = vmatprep.subr.mxu0 0.0
  %92 = vmatpush2.xpose.msra.mxu0 0.0
  %93 = vmatprep.subr.mxu0 0.0
  %94 = vmatpush2.xpose.msra.mxu0 0.0
  %95 = vmatprep.subr.mxu0 0.0
  %96 = vmatpush2.xpose.msra.mxu0 0.0
  %97 = vmatprep.subr.mxu0 0.0
  %98 = vmatpush2.xpose.msra.mxu0 0.0
  %99 = vmatprep.subr.mxu0 0.0
  %100 = vmatpush2.xpose.msra.mxu0 0.0
  %101 = vmatprep.mubr.f32.mxu0 0.0
  %102 = vmatmul.mubr.f32.gmra.mxu0 %v32
  %v103 = vpop.f32.mrf.mxu0
  %v104 = vadd.f32 %v28, %v103
  %v105 = vpop.f32.mrf.mxu0
  %106 = vdwg.mxu0
  %v107 = vmax.f32 %v104, 0.0
  %v108 = vld [vmem:[%s4] sm:$0x1]
  %v110 = vlaneseq
  %v111 = vshrl.u32 %v110, 7
  %v112 = vsub.s32 0, %v111
  %v113 = vrot.slane %v108, %v112
  %vm115 = vcmask 15360
  %v117 = vsel %vm115, %v107, 0
  %v120 = vsel %vm115, %v22, 0
  %122 = vmatprep.subr.mxu0 0.0
  %123 = vmatpush1.xpose.msra.mxu0 0.0
  %124 = vmatprep.subr.mxu0 0.0
  %125 = vmatpush1.xpose.msra.mxu0 0.0
  %126 = vmatprep.subr.mxu0 0.0
  %127 = vmatpush1.xpose.msra.mxu0 0.0
  %128 = vmatprep.subr.mxu0 0.0
  %129 = vmatpush1.xpose.msra.mxu0 0.0
  %130 = vmatprep.subr.mxu0 0.0
  %131 = vmatpush1.xpose.msra.mxu0 0.0
  %132 = vmatprep.subr.mxu0 0.0
  %133 = vmatpush1.xpose.msra.mxu0 0.0
  %134 = vmatprep.subr.mxu0 0.0
  %135 = vmatpush1.xpose.msra.mxu0 0.0
  %136 = vmatprep.subr.mxu0 0.0
  %137 = vmatpush1.xpose.msra.mxu0 0.0
  %138 = vmatprep.subr.mxu0 0.0
  %139 = vmatpush1.xpose.msra.mxu0 0.0
  %140 = vmatprep.subr.mxu0 0.0
  %141 = vmatpush1.xpose.msra.mxu0 0.0
  %142 = vmatprep.subr.mxu0 0.0
  %143 = vmatpush1.xpose.msra.mxu0 0.0
  %144 = vmatprep.subr.mxu0 0.0
  %145 = vmatpush1.xpose.msra.mxu0 0.0
  %146 = vmatprep.subr.mxu0 0.0
  %147 = vmatpush1.xpose.msra.mxu0 0.0
  %148 = vmatprep.subr.mxu0 0.0
  %149 = vmatpush1.xpose.msra.mxu0 0.0
  %150 = vmatprep.subr.mxu0 0.0
  %151 = vmatpush1.xpose.msra.mxu0 0.0
  %152 = vmatprep.subr.mxu0 0.0
  %153 = vmatpush1.xpose.msra.mxu0 %v120
  %154 = vmatprep.subr.mxu0 0.0
  %155 = vmatpush2.xpose.msra.mxu0 0.0
  %156 = vmatprep.subr.mxu0 0.0
  %157 = vmatpush2.xpose.msra.mxu0 0.0
  %158 = vmatprep.subr.mxu0 0.0
  %159 = vmatpush2.xpose.msra.mxu0 0.0
  %160 = vmatprep.subr.mxu0 0.0
  %161 = vmatpush2.xpose.msra.mxu0 0.0
  %162 = vmatprep.subr.mxu0 0.0
  %163 = vmatpush2.xpose.msra.mxu0 0.0
  %164 = vmatprep.subr.mxu0 0.0
  %165 = vmatpush2.xpose.msra.mxu0 0.0
  %166 = vmatprep.subr.mxu0 0.0
  %167 = vmatpush2.xpose.msra.mxu0 0.0
  %168 = vmatprep.subr.mxu0 0.0
  %169 = vmatpush2.xpose.msra.mxu0 0.0
  %170 = vmatprep.subr.mxu0 0.0
  %171 = vmatpush2.xpose.msra.mxu0 0.0
  %172 = vmatprep.subr.mxu0 0.0
  %173 = vmatpush2.xpose.msra.mxu0 0.0
  %174 = vmatprep.subr.mxu0 0.0
  %175 = vmatpush2.xpose.msra.mxu0 0.0
  %176 = vmatprep.subr.mxu0 0.0
  %177 = vmatpush2.xpose.msra.mxu0 0.0
  %178 = vmatprep.subr.mxu0 0.0
  %179 = vmatpush2.xpose.msra.mxu0 0.0
  %180 = vmatprep.subr.mxu0 0.0
  %181 = vmatpush2.xpose.msra.mxu0 0.0
  %182 = vmatprep.subr.mxu0 0.0
  %183 = vmatpush2.xpose.msra.mxu0 0.0
  %184 = vmatprep.subr.mxu0 0.0
  %185 = vmatpush2.xpose.msra.mxu0 0.0
  %186 = vmatprep.mubr.f32.mxu0 0.0
  %187 = vmatmul.mubr.f32.gmra.mxu0 %v117
  %v188 = vpop.f32.mrf.mxu0
  %v189 = vadd.f32 %v113, %v188
  %v190 = vpop.f32.mrf.mxu0
  %191 = vdwg.mxu0
  %v192 = vand.u32 2147483647, %v189
  %v193 = vsub.f32 0.0, %v192
  %v194 = vmul.f32 %v193, 1.442695
  %v195 = vpow.pop %v194
  %vm196 = vcmp.ge.f32.partialorder %v189, 0.0
  %v197 = vadd.f32 %v195, 1.0
  %v198 = vrcp.pop %v197
  %v199 = vmul.f32 1.0, %v198
  %v200 = vmul.f32 %v195, %v198
  %v201 = vsel %vm196, %v199, %v200
  %vm202 = vcmask 25600
  %203 = vst.msk [vmem:[%s5] sm:$0x3] %vm202, %v201
  // Predicated region
  $region22: #{channelenhance_forward.4} parent=0 // pred_check
    _
  $region23: #{channelenhance_forward.4} parent=0 // pred_check_branch
    %205 = sbr.rel (0) target = $region25
  $region24: #{channelenhance_forward.4} parent=0 // pred_region
    _
  $region25: #{channelenhance_forward.4} parent=0 // pred_fallthru
    _
  // Predicated region
  $region26: #{channelenhance_forward.4} parent=0 // pred_check
    _
  $region27: #{channelenhance_forward.4} parent=0 // pred_check_branch
    %207 = sbr.rel (0) target = $region29
  $region28: #{channelenhance_forward.4} parent=0 // pred_region
    _
  $region29: #{channelenhance_forward.4} parent=0 // pred_fallthru
    _

// kernel: channelenhance_forward.5
$region0: #{channelenhance_forward.5}
  #allocation0 [shape = 'u32[]', space=smem, size = 0x4, offset = 0x4, fixed_abs, tag = 'smem constant byte address 0x4 - core index']
  #allocation1 [shape = 'u32[144,128]{1,0:T(1,128)}', space=vmem, size = 0x12000, scoped, tag = 'internal scratch']
  #allocation2 [shape = 's32[8]{0}', space=sflag, size = 0x20, scoped, tag = 'scratch operand']
  #allocation3 [shape = 's32[1]{0}', space=sflag, size = 0x4, scoped, tag = 'scoped memory for channelenhance_forward.5']
  #allocation4 [shape = 'u8[1024]{0}', space=smem, size = 0x400, scoped, tag = 'prefetched SMEM operand 0']
  #allocation5 [shape = 's32[]', space=sflag, size = 0x4, offset = 0, fixed_abs, tag = 'sflag constant byte address 0x0 - dummy sync flag']
  #allocation6 [shape = 's32[]', space=sflag, size = 0x4, offset = 0, fixed_abs, tag = 'sflag constant byte address 0x0 - dummy sync flag']
  %s0 = inlined_call_operand.vmem [shape: s32[2,4], index: 0, kind: input, shape index: {}]
  %s1 = inlined_call_operand.vmem [shape: f32[8,256], index: 1, kind: input, shape index: {}]
  %s2 = inlined_call_operand.vmem [shape: f32[4,256], index: 2, kind: output, shape index: {0}]
  %s3 = inlined_call_operand.vmem [shape: f32[4,256], index: 3, kind: output, shape index: {1}]
  %4 = xla_tuple %s2, %s3
  %s5 = sld [smem:[#allocation0]]
  $region97: #{channelenhance_forward.5} parent=0
    _
  %s7 = ssub.s32 1, %s5
  %s8 = scalar_select 0, %s7, %s5
  %s9 = sshll.u32 %s0, 4
  %s10 = int_to_ptr.vmem [resolvable:$true] %s9
  %12 = dma.vmem_to_smem %s10, 32, [#allocation4], [#allocation3]
  %13 = dma.done [#allocation3], 32
  %14 = sfence
  loop: start=0, step=1, limit=2
  $region2: #{channelenhance_forward.5} parent=0 // loop_pre_header
    _
  $region3: #{channelenhance_forward.5} parent=0 // loop_header
    %s16 = sphi 0, %s20
    %p17 = scmp.ge.s32.totalorder %s16, 2
  $region4: #{channelenhance_forward.5} parent=0 // loop_header_branch
    %19 = sbr.rel (%p17) target = $region8
  $region5: #{channelenhance_forward.5} parent=0 // loop_body
    %s21 = sadd.s32 %s16, 1
    loop: start=0, step=1, limit=2
    $region9: #{channelenhance_forward.5} parent=5 // loop_pre_header
      _
    $region10: #{channelenhance_forward.5} parent=5 // loop_header
      %s23 = sphi 0, %s27
      %p24 = scmp.ge.s32.totalorder %s23, 2
    $region11: #{channelenhance_forward.5} parent=5 // loop_header_branch
      %26 = sbr.rel (%p24) target = $region15
    $region12: #{channelenhance_forward.5} parent=5 // loop_body
      %s28 = smul.u32 %s16, 4
      %s29 = sshra.s32 %s23, 7
      %s30 = sand.u32 %s23, 127
      %s31 = sadd.s32 %s29, %s16
      %s32 = smul.u32 %s31, 128
      %s33 = sshra.s32 %s23, 7
      %s34 = sand.u32 %s23, 127
      %s35 = sadd.s32 %s32, %s34
      %s36 = sld [smem:[#allocation4 + %s35]]
      %s37 = sadd.s32 %s28, %s36
      %s38 = smul.u32 %s16, 2
      %s39 = sadd.s32 %s38, %s23
      %p40 = scmp.lt.s32.totalorder %s23, 0
      %s41 = ssub.s32 0, %s23
      %s42 = scalar_select %p40, %s41, %s23
      %s43 = sand.u32 %s42, 7
      %s44 = ssub.s32 0, %s43
      %s45 = scalar_select %p40, %s44, %s43
      %p46 = scmp.ne.s32.totalorder %s45, 0
      %p47 = scmp.lt.s32.totalorder %s45, 0
      %p48 = pnand %p47, %p46
      %p49 = pneg %p48
      %s50 = sadd.s32 %s45, 8
      %s51 = scalar_select %p49, %s50, %s45
      %s52 = sshrl.u32 %s37, 3
      %s53 = sand.u32 %s37, 7
      %s54 = smul.u32 %s52, 16
      %s55 = sadd.s32 %s53, %s54
      %s56 = scalar_lea.vmem %s1, %s55
      %s57 = sshrl.u32 %s39, 2
      %s58 = sand.u32 %s39, 3
      %s59 = smul.u32 %s57, 8
      %s60 = sadd.s32 %s58, %s59
      %s61 = scalar_lea.vmem %s2, %s60
      %s62 = scalar_lea.sflag [#allocation2], %s51
      %p64 = scmp.lt.u32.totalorder 1, 8
      %p65 = pneg %p64
      // Predicated region
      $region16: #{channelenhance_forward.5} parent=12 // pred_check
        _
      $region17: #{channelenhance_forward.5} parent=12 // pred_check_branch
        %67 = sbr.rel (%p64) target = $region19
      $region18: #{channelenhance_forward.5} parent=12 // pred_region
        %s85 = sand.u32 1, 7
        %p86 = scmp.eq.s32.totalorder %s85, 0
        %p87 = pneg %p86
        // Predicated region
        $region31: #{channelenhance_forward.5} parent=18 // pred_check
          _
        $region32: #{channelenhance_forward.5} parent=18 // pred_check_branch
          %89 = sbr.rel (%p86) target = $region34
        $region33: #{channelenhance_forward.5} parent=18 // pred_region
          %s90 = sand.u32 1, 7
          %s91 = ssub.s32 1, %s90
          %s92 = scalar_lea.vmem %s56, %s91
          %s93 = ssub.s32 1, %s90
          %s94 = scalar_lea.vmem %s61, %s93
          %s95 = sshll.u32 1, %s90
          %s96 = ssub.s32 %s95, 1
          loop: start=0, step=1, limit=1
          $region35: #{channelenhance_forward.5} parent=33 // loop_pre_header
            _
          $region36: #{channelenhance_forward.5} parent=33 // loop_header
            %s98 = sphi 0, %s102
            %p99 = scmp.ge.s32.totalorder %s98, 1
            %s103 = sphi %s92, %s92
            %s104 = sphi %s94, %s94
          $region37: #{channelenhance_forward.5} parent=33 // loop_header_branch
            %101 = sbr.rel (%p99) target = $region41
          $region38: #{channelenhance_forward.5} parent=33 // loop_body
            %v105 = vld [vmem:[%s103] sm:%s96]
            %106 = vst [vmem:[%s104] sm:%s96] %v105
            %v107 = vld [vmem:[%s103 + $0x8] sm:%s96]
            %108 = vst [vmem:[%s104 + $0x4] sm:%s96] %v107
          $region39: #{channelenhance_forward.5} parent=33 // loop_footer
            %s102 = sadd.s32 1, %s98
          $region40: #{channelenhance_forward.5} parent=33 // loop_footer_branch
            %97 = sbr.rel target = $region36
          $region41: #{channelenhance_forward.5} parent=33 // loop_exit
            _
        $region34: #{channelenhance_forward.5} parent=18 // pred_fallthru
          _
      $region19: #{channelenhance_forward.5} parent=12 // pred_fallthru
        _
      // Predicated region
      $region20: #{channelenhance_forward.5} parent=12 // pred_check
        %p68 = pneg %p64
      $region21: #{channelenhance_forward.5} parent=12 // pred_check_branch
        %70 = sbr.rel (%p68) target = $region23
      $region22: #{channelenhance_forward.5} parent=12 // pred_region
        %s71 = sshll.u32 1, 1
        %s72 = ssub.s32 %s71, 1
        loop: start=0, step=1, limit=1
        $region24: #{channelenhance_forward.5} parent=22 // loop_pre_header
          _
        $region25: #{channelenhance_forward.5} parent=22 // loop_header
          %s74 = sphi 0, %s78
          %p75 = scmp.ge.s32.totalorder %s74, 1
          %s79 = sphi %s56, %s56
          %s80 = sphi %s61, %s61
        $region26: #{channelenhance_forward.5} parent=22 // loop_header_branch
          %77 = sbr.rel (%p75) target = $region30
        $region27: #{channelenhance_forward.5} parent=22 // loop_body
          %v81 = vld [vmem:[%s79] sm:%s72]
          %82 = vst [vmem:[%s80] sm:%s72] %v81
          %v83 = vld [vmem:[%s79 + $0x8] sm:%s72]
          %84 = vst [vmem:[%s80 + $0x4] sm:%s72] %v83
        $region28: #{channelenhance_forward.5} parent=22 // loop_footer
          %s78 = sadd.s32 1, %s74
        $region29: #{channelenhance_forward.5} parent=22 // loop_footer_branch
          %73 = sbr.rel target = $region25
        $region30: #{channelenhance_forward.5} parent=22 // loop_exit
          _
      $region23: #{channelenhance_forward.5} parent=12 // pred_fallthru
        _
      // Predicated region
      $region42: #{channelenhance_forward.5} parent=12 // pred_check
        _
      $region43: #{channelenhance_forward.5} parent=12 // pred_check_branch
        %111 = sbr.rel (0) target = $region45
      $region44: #{channelenhance_forward.5} parent=12 // pred_region
        %112 = vsyncadd %s62, 32
      $region45: #{channelenhance_forward.5} parent=12 // pred_fallthru
        _
    $region13: #{channelenhance_forward.5} parent=5 // loop_footer
      %s27 = sadd.s32 1, %s23
    $region14: #{channelenhance_forward.5} parent=5 // loop_footer_branch
      %22 = sbr.rel target = $region10
    $region15: #{channelenhance_forward.5} parent=5 // loop_exit
      _
    loop: start=0, step=1, limit=2
    $region46: #{channelenhance_forward.5} parent=5 // loop_pre_header
      _
    $region47: #{channelenhance_forward.5} parent=5 // loop_header
      %s114 = sphi 0, %s118
      %p115 = scmp.ge.s32.totalorder %s114, 2
    $region48: #{channelenhance_forward.5} parent=5 // loop_header_branch
      %117 = sbr.rel (%p115) target = $region52
    $region49: #{channelenhance_forward.5} parent=5 // loop_body
      %p119 = scmp.lt.s32.totalorder %s114, 0
      %s120 = ssub.s32 0, %s114
      %s121 = scalar_select %p119, %s120, %s114
      %s122 = sand.u32 %s121, 7
      %s123 = ssub.s32 0, %s122
      %s124 = scalar_select %p119, %s123, %s122
      %p125 = scmp.ne.s32.totalorder %s124, 0
      %p126 = scmp.lt.s32.totalorder %s124, 0
      %p127 = pnand %p126, %p125
      %p128 = pneg %p127
      %s129 = sadd.s32 %s124, 8
      %s130 = scalar_select %p128, %s129, %s124
      %s131 = scalar_lea.sflag [#allocation2], %s130
      %133 = dma.done %s131, 32
    $region50: #{channelenhance_forward.5} parent=5 // loop_footer
      %s118 = sadd.s32 1, %s114
    $region51: #{channelenhance_forward.5} parent=5 // loop_footer_branch
      %113 = sbr.rel target = $region47
    $region52: #{channelenhance_forward.5} parent=5 // loop_exit
      _
    loop: start=0, step=1, limit=2
    $region53: #{channelenhance_forward.5} parent=5 // loop_pre_header
      _
    $region54: #{channelenhance_forward.5} parent=5 // loop_header
      %s135 = sphi 0, %s139
      %p136 = scmp.ge.s32.totalorder %s135, 2
    $region55: #{channelenhance_forward.5} parent=5 // loop_header_branch
      %138 = sbr.rel (%p136) target = $region59
    $region56: #{channelenhance_forward.5} parent=5 // loop_body
      %s140 = smul.u32 %s16, 4
      %s141 = sadd.s32 %s135, 2
      %s142 = sshra.s32 %s141, 7
      %s143 = sand.u32 %s141, 127
      %s144 = sadd.s32 %s142, %s16
      %s145 = smul.u32 %s144, 128
      %s146 = sshra.s32 %s141, 7
      %s147 = sand.u32 %s141, 127
      %s148 = sadd.s32 %s145, %s147
      %s149 = sld [smem:[#allocation4 + %s148]]
      %s150 = sadd.s32 %s140, %s149
      %s151 = smul.u32 %s16, 2
      %s152 = sadd.s32 %s151, %s135
      %p153 = scmp.lt.s32.totalorder %s135, 0
      %s154 = ssub.s32 0, %s135
      %s155 = scalar_select %p153, %s154, %s135
      %s156 = sand.u32 %s155, 7
      %s157 = ssub.s32 0, %s156
      %s158 = scalar_select %p153, %s157, %s156
      %p159 = scmp.ne.s32.totalorder %s158, 0
      %p160 = scmp.lt.s32.totalorder %s158, 0
      %p161 = pnand %p160, %p159
      %p162 = pneg %p161
      %s163 = sadd.s32 %s158, 8
      %s164 = scalar_select %p162, %s163, %s158
      %s165 = sshrl.u32 %s150, 3
      %s166 = sand.u32 %s150, 7
      %s167 = smul.u32 %s165, 16
      %s168 = sadd.s32 %s166, %s167
      %s169 = scalar_lea.vmem %s1, %s168
      %s170 = sshrl.u32 %s152, 2
      %s171 = sand.u32 %s152, 3
      %s172 = smul.u32 %s170, 8
      %s173 = sadd.s32 %s171, %s172
      %s174 = scalar_lea.vmem %s3, %s173
      %s175 = scalar_lea.sflag [#allocation2], %s164
      %p177 = scmp.lt.u32.totalorder 1, 8
      %p178 = pneg %p177
      // Predicated region
      $region60: #{channelenhance_forward.5} parent=56 // pred_check
        _
      $region61: #{channelenhance_forward.5} parent=56 // pred_check_branch
        %180 = sbr.rel (%p177) target = $region63
      $region62: #{channelenhance_forward.5} parent=56 // pred_region
        %s198 = sand.u32 1, 7
        %p199 = scmp.eq.s32.totalorder %s198, 0
        %p200 = pneg %p199
        // Predicated region
        $region75: #{channelenhance_forward.5} parent=62 // pred_check
          _
        $region76: #{channelenhance_forward.5} parent=62 // pred_check_branch
          %202 = sbr.rel (%p199) target = $region78
        $region77: #{channelenhance_forward.5} parent=62 // pred_region
          %s203 = sand.u32 1, 7
          %s204 = ssub.s32 1, %s203
          %s205 = scalar_lea.vmem %s169, %s204
          %s206 = ssub.s32 1, %s203
          %s207 = scalar_lea.vmem %s174, %s206
          %s208 = sshll.u32 1, %s203
          %s209 = ssub.s32 %s208, 1
          loop: start=0, step=1, limit=1
          $region79: #{channelenhance_forward.5} parent=77 // loop_pre_header
            _
          $region80: #{channelenhance_forward.5} parent=77 // loop_header
            %s211 = sphi 0, %s215
            %p212 = scmp.ge.s32.totalorder %s211, 1
            %s216 = sphi %s205, %s205
            %s217 = sphi %s207, %s207
          $region81: #{channelenhance_forward.5} parent=77 // loop_header_branch
            %214 = sbr.rel (%p212) target = $region85
          $region82: #{channelenhance_forward.5} parent=77 // loop_body
            %v218 = vld [vmem:[%s216] sm:%s209]
            %219 = vst [vmem:[%s217] sm:%s209] %v218
            %v220 = vld [vmem:[%s216 + $0x8] sm:%s209]
            %221 = vst [vmem:[%s217 + $0x4] sm:%s209] %v220
          $region83: #{channelenhance_forward.5} parent=77 // loop_footer
            %s215 = sadd.s32 1, %s211
          $region84: #{channelenhance_forward.5} parent=77 // loop_footer_branch
            %210 = sbr.rel target = $region80
          $region85: #{channelenhance_forward.5} parent=77 // loop_exit
            _
        $region78: #{channelenhance_forward.5} parent=62 // pred_fallthru
          _
      $region63: #{channelenhance_forward.5} parent=56 // pred_fallthru
        _
      // Predicated region
      $region64: #{channelenhance_forward.5} parent=56 // pred_check
        %p181 = pneg %p177
      $region65: #{channelenhance_forward.5} parent=56 // pred_check_branch
        %183 = sbr.rel (%p181) target = $region67
      $region66: #{channelenhance_forward.5} parent=56 // pred_region
        %s184 = sshll.u32 1, 1
        %s185 = ssub.s32 %s184, 1
        loop: start=0, step=1, limit=1
        $region68: #{channelenhance_forward.5} parent=66 // loop_pre_header
          _
        $region69: #{channelenhance_forward.5} parent=66 // loop_header
          %s187 = sphi 0, %s191
          %p188 = scmp.ge.s32.totalorder %s187, 1
          %s192 = sphi %s169, %s169
          %s193 = sphi %s174, %s174
        $region70: #{channelenhance_forward.5} parent=66 // loop_header_branch
          %190 = sbr.rel (%p188) target = $region74
        $region71: #{channelenhance_forward.5} parent=66 // loop_body
          %v194 = vld [vmem:[%s192] sm:%s185]
          %195 = vst [vmem:[%s193] sm:%s185] %v194
          %v196 = vld [vmem:[%s192 + $0x8] sm:%s185]
          %197 = vst [vmem:[%s193 + $0x4] sm:%s185] %v196
        $region72: #{channelenhance_forward.5} parent=66 // loop_footer
          %s191 = sadd.s32 1, %s187
        $region73: #{channelenhance_forward.5} parent=66 // loop_footer_branch
          %186 = sbr.rel target = $region69
        $region74: #{channelenhance_forward.5} parent=66 // loop_exit
          _
      $region67: #{channelenhance_forward.5} parent=56 // pred_fallthru
        _
      // Predicated region
      $region86: #{channelenhance_forward.5} parent=56 // pred_check
        _
      $region87: #{channelenhance_forward.5} parent=56 // pred_check_branch
        %224 = sbr.rel (0) target = $region89
      $region88: #{channelenhance_forward.5} parent=56 // pred_region
        %225 = vsyncadd %s175, 32
      $region89: #{channelenhance_forward.5} parent=56 // pred_fallthru
        _
    $region57: #{channelenhance_forward.5} parent=5 // loop_footer
      %s139 = sadd.s32 1, %s135
    $region58: #{channelenhance_forward.5} parent=5 // loop_footer_branch
      %134 = sbr.rel target = $region54
    $region59: #{channelenhance_forward.5} parent=5 // loop_exit
      _
    loop: start=0, step=1, limit=2
    $region90: #{channelenhance_forward.5} parent=5 // loop_pre_header
      _
    $region91: #{channelenhance_forward.5} parent=5 // loop_header
      %s227 = sphi 0, %s231
      %p228 = scmp.ge.s32.totalorder %s227, 2
    $region92: #{channelenhance_forward.5} parent=5 // loop_header_branch
      %230 = sbr.rel (%p228) target = $region96
    $region93: #{channelenhance_forward.5} parent=5 // loop_body
      %p232 = scmp.lt.s32.totalorder %s227, 0
      %s233 = ssub.s32 0, %s227
      %s234 = scalar_select %p232, %s233, %s227
      %s235 = sand.u32 %s234, 7
      %s236 = ssub.s32 0, %s235
      %s237 = scalar_select %p232, %s236, %s235
      %p238 = scmp.ne.s32.totalorder %s237, 0
      %p239 = scmp.lt.s32.totalorder %s237, 0
      %p240 = pnand %p239, %p238
      %p241 = pneg %p240
      %s242 = sadd.s32 %s237, 8
      %s243 = scalar_select %p241, %s242, %s237
      %s244 = scalar_lea.sflag [#allocation2], %s243
      %246 = dma.done %s244, 32
    $region94: #{channelenhance_forward.5} parent=5 // loop_footer
      %s231 = sadd.s32 1, %s227
    $region95: #{channelenhance_forward.5} parent=5 // loop_footer_branch
      %226 = sbr.rel target = $region91
    $region96: #{channelenhance_forward.5} parent=5 // loop_exit
      _
  $region6: #{channelenhance_forward.5} parent=0 // loop_footer
    %s20 = sadd.s32 1, %s16
  $region7: #{channelenhance_forward.5} parent=0 // loop_footer_branch
    %15 = sbr.rel target = $region3
  $region8: #{channelenhance_forward.5} parent=0 // loop_exit
    _
  %247 = vsyncmov [#allocation2]
  %s248 = vpop.sfrf %247
  %p249 = scmp.eq.s32.totalorder %s248, 0
  %p250 = pneg %p249
  %252 = shalt.err (%p250)
  %s253 = scalar_lea.sflag [#allocation2], 1
  %254 = vsyncmov %s253
  %s255 = vpop.sfrf %254
  %p256 = scmp.eq.s32.totalorder %s255, 0
  %p257 = pneg %p256
  %259 = shalt.err (%p257)
  %s260 = scalar_lea.sflag [#allocation2], 2
  %261 = vsyncmov %s260
  %s262 = vpop.sfrf %261
  %p263 = scmp.eq.s32.totalorder %s262, 0
  %p264 = pneg %p263
  %266 = shalt.err (%p264)
  %s267 = scalar_lea.sflag [#allocation2], 3
  %268 = vsyncmov %s267
  %s269 = vpop.sfrf %268
  %p270 = scmp.eq.s32.totalorder %s269, 0
  %p271 = pneg %p270
  %273 = shalt.err (%p271)
  %s274 = scalar_lea.sflag [#allocation2], 4
  %275 = vsyncmov %s274
  %s276 = vpop.sfrf %275
  %p277 = scmp.eq.s32.totalorder %s276, 0
  %p278 = pneg %p277
  %280 = shalt.err (%p278)
  %s281 = scalar_lea.sflag [#allocation2], 5
  %282 = vsyncmov %s281
  %s283 = vpop.sfrf %282
  %p284 = scmp.eq.s32.totalorder %s283, 0
  %p285 = pneg %p284
  %287 = shalt.err (%p285)
  %s288 = scalar_lea.sflag [#allocation2], 6
  %289 = vsyncmov %s288
  %s290 = vpop.sfrf %289
  %p291 = scmp.eq.s32.totalorder %s290, 0
  %p292 = pneg %p291
  %294 = shalt.err (%p292)
  %s295 = scalar_lea.sflag [#allocation2], 7
  %296 = vsyncmov %s295
  %s297 = vpop.sfrf %296
  %p298 = scmp.eq.s32.totalorder %s297, 0
  %p299 = pneg %p298
  %301 = shalt.err (%p299)

</llo_original>
